<compile_context>
chip_gen: v7x
topology: tpu7x:2x2x1
jax: 0.10.0
libtpu: 0.0.40
codegen_flags: <defaults>
</compile_context>

<pallas_src>
import functools

import jax
import jax.numpy as jnp
from jax import lax
from jax.experimental import pallas as pl
from jax.experimental.pallas import tpu as pltpu

_RHS_LANES = 128  # lane-dense width for the fused num/den matmul rhs


def cple_kernel(preds_ref, labels_ref, out_ref, *, alpha, beta):
    preds = preds_ref[...]            # (B, C) f32, B == C (torch broadcast quirk)
    lab = labels_ref[...]             # (B, 1) i32
    B, C = preds.shape

    # ---- log-sum-exp pieces (no full softmax / log_softmax materialized) ----
    m = jnp.max(preds, axis=1, keepdims=True)              # (B, 1)
    z = preds - m                                          # (B, C)
    e = jnp.exp(z)                                         # (B, C)
    s = jnp.sum(e, axis=1, keepdims=True)                  # (B, 1)
    log_s = jnp.log(s)                                     # (B, 1)
    # EUP approximate reciprocal: runs on its own bundle slot; the small
    # relative error is absorbed by the following |p1 - label| / exp(-alpha*.).
    inv_s = pl.reciprocal(s, approx=True)                  # (B, 1)

    # ---- epsilon = |softmax[:, 1] - labels| ;  D = exp(-alpha * epsilon) ----
    lab_f = lab.astype(jnp.float32)                        # (B, 1)
    p1 = e[:, 1:2] * inv_s                                 # (B, 1) softmax column 1
    d_col = jnp.exp(-alpha * jnp.abs(p1 - lab_f))          # (B, 1)

    # ---- CrossEntropyLoss(reduction='none'): -log_softmax[i, label[i]] ----
    col_ids = lax.broadcasted_iota(jnp.int32, (B, C), 1)
    z_lab = jnp.sum(jnp.where(col_ids == lab, z, 0.0), axis=1, keepdims=True)
    bl_col = log_s - z_lab                                 # (B, 1) per-sample CE

    # ---- pairwise term pair[i,c] = sum_{j != i} |preds[i,c] - preds[j,c]| ----
    # Shift symmetry: the |diff| tile for shift s, rolled by another s along
    # sublanes, equals the tile for shift B-s, so each abs-diff is computed
    # once and reused (the extra roll uses the XLU slot, not the VPU).
    # NOTE: a bf16 variant (2x VPU throughput on v6e/v7x) was considered but
    # kept in f32 to preserve accumulation precision on all generations.
    pair = jnp.zeros((B, C), jnp.float32)
    half = (B - 1) // 2
    if B <= 32:
        # Small B: fully unrolled static shifts (demo path).
        for sft in range(1, half + 1):
            a = jnp.abs(preds - pltpu.roll(preds, shift=sft, axis=0))
            pair = pair + a + pltpu.roll(a, shift=B - sft, axis=0)
    else:
        # Large B: bounded live ranges + visible steady-state loop for the
        # LLO scheduler instead of a huge unrolled chain.
        def body(sft, acc):
            a = jnp.abs(preds - pltpu.roll(preds, shift=sft, axis=0))
            return acc + a + pltpu.roll(a, shift=B - sft, axis=0)
        pair = lax.fori_loop(1, half + 1, body, pair, unroll=4)
    if B % 2 == 0 and B >= 2:
        # Middle shift pairs with itself for even B: add it exactly once.
        pair = pair + jnp.abs(preds - pltpu.roll(preds, shift=B // 2, axis=0))
    n_mat = jnp.exp(-beta * pair)                          # (B, C)

    # ---- weighted = sum_{i,j} N[i,j]*D[j]*CE[j] / sum_{i,j} N[i,j]*D[j] ----
    # One MXU matmul: rhs lane 0 = D*CE, lane 1 = D, rest zero (lane-dense).
    lane_ids = lax.broadcasted_iota(jnp.int32, (B, _RHS_LANES), 1)
    rhs = jnp.where(lane_ids == 0, d_col * bl_col,
                    jnp.where(lane_ids == 1, d_col, 0.0))  # (B, 128)
    v = jnp.dot(n_mat, rhs, preferred_element_type=jnp.float32)  # (B, 128)
    sums = jnp.sum(v[:, 0:2], axis=0, keepdims=True)       # (1, 2)
    weighted = sums[:, 0:1] / sums[:, 1:2]                 # (1, 1)

    # ---- reg_loss = 0.01 * mean(preds ** 2) ----
    reg = 0.01 * jnp.mean(preds * preds, keepdims=True)    # (1, 1)

    out_ref[...] = (weighted + reg).astype(out_ref.dtype)


def cple_loss(preds, labels, alpha=0.5, beta=1.0):
    preds = jnp.asarray(preds, jnp.float32)
    B, C = preds.shape
    assert B == C, ("CPLELoss broadcasting (as written in the torch module) "
                    "requires num_classes == batch")
    assert C >= 2, "epsilon uses softmax column 1, so num_classes >= 2"
    labels2d = jnp.asarray(labels, jnp.int32).reshape(B, 1)

    # Hardware-aware scoped-VMEM budget: count the actual live buffers
    # (double-buffered input blocks + ~6-8 live (B,C) f32 temporaries) and
    # clamp to the device's physical VMEM minus headroom (v7x only has 64 MiB).
    try:
        cap = int(getattr(pltpu.get_tpu_info(), "vmem_capacity_bytes",
                          64 * 1024 * 1024))
    except Exception:  # pragma: no cover - conservative fallback (v7x-safe)
        cap = 64 * 1024 * 1024
    live_bytes = (2 * (B * C + B) * 4        # double-buffered input blocks
                  + 8 * B * C * 4            # live (B,C) f32 temporaries
                  + (1 << 20))               # compiler-internal scratch slack
    vmem_bytes = int(max(8 << 20, min(live_bytes, cap - (16 << 20))))

    # NOTE: for very large B=C (>= a few hundred) this should grow a column-
    # block grid axis with partial-sum accumulators; unnecessary at this size.
    out = pl.pallas_call(
        functools.partial(cple_kernel, alpha=alpha, beta=beta),
        out_shape=jax.ShapeDtypeStruct((1, 1), jnp.float32),
        grid=(1,),
        in_specs=[
            pl.BlockSpec((B, C), lambda i: (0, 0)),
            pl.BlockSpec((B, 1), lambda i: (0, 0)),
        ],
        out_specs=pl.BlockSpec((1, 1), lambda i: (0, 0)),
        compiler_params=pltpu.CompilerParams(
            dimension_semantics=("arbitrary",),
            vmem_limit_bytes=vmem_bytes,
        ),
    )(preds, labels2d)
    return out[0, 0]


def cple_loss_ref(preds, labels, alpha=0.5, beta=1.0):
    """Pure-JAX transcription of the PyTorch forward (for validation)."""
    p = jax.nn.softmax(preds, axis=1)
    eps = jnp.abs(p[:, 1] - labels.astype(preds.dtype))
    logp = jax.nn.log_softmax(preds, axis=1)
    base = -jnp.take_along_axis(logp, labels.astype(jnp.int32)[:, None],
                                axis=1)[:, 0]
    D = jnp.exp(-alpha * eps)
    N = jnp.exp(-beta * jnp.sum(jnp.abs(preds[:, None, :] - preds[None, :, :]),
                                axis=1))
    W = D * N                       # (B,) vs (B,C): W[i,j] = D[j]*N[i,j]
    weights = W / jnp.sum(W)
    weighted = jnp.sum(weights * base)
    reg = 0.01 * jnp.mean(preds ** 2)
    return weighted + reg


if __name__ == "__main__":
    key = jax.random.PRNGKey(0)
    k1, k2 = jax.random.split(key)

    B = C = 8  # the torch module's broadcasting only works when C == B
    preds = jax.random.normal(k1, (B, C), dtype=jnp.float32)
    labels = jax.random.randint(k2, (B,), 0, 2, dtype=jnp.int32)  # binary-style

    out = jax.block_until_ready(cple_loss(preds, labels, alpha=0.5, beta=1.0))
    ref = jax.block_until_ready(cple_loss_ref(preds, labels, alpha=0.5, beta=1.0))
    # Tolerance allows for the EUP approximate-reciprocal in the kernel softmax.
    if not jnp.allclose(out, ref, rtol=2e-3, atol=1e-5):
        raise AssertionError(f"mismatch: kernel={out} ref={ref}")

    print("KERNEL_OK")
</pallas_src>

<mosaic_0001>
module attributes {stable_mosaic.version = 11 : i64} {
  func.func @cple_kernel(%arg0: i32, %arg1: memref<8x8xf32, #tpu.memory_space<vmem>>, %arg2: memref<8x1xi32, #tpu.memory_space<vmem>>, %arg3: memref<1x1xf32, #tpu.memory_space<vmem>>) attributes {dimension_semantics = [#tpu.dimension_semantics<arbitrary>], iteration_bounds = array<i64: 1>, scalar_prefetch = 0 : i64, scratch_operands = 0 : i64, tpu.core_type = #tpu.core_type<tc>, window_params = [{pipeline_mode = #tpu.pipeline_mode<synchronous>, transform_indices = @transform_0, window_bounds = array<i64: 8, 8>}, {pipeline_mode = #tpu.pipeline_mode<synchronous>, transform_indices = @transform_1, window_bounds = array<i64: 8, 1>}, {pipeline_mode = #tpu.pipeline_mode<synchronous>, transform_indices = @transform_2, window_bounds = array<i64: 1, 1>}]} {
    %c0 = arith.constant 0 : index
    %c0_0 = arith.constant 0 : index
    %0 = vector.load %arg1[%c0, %c0_0] : memref<8x8xf32, #tpu.memory_space<vmem>>, vector<8x8xf32>
    %c0_1 = arith.constant 0 : index
    %c0_2 = arith.constant 0 : index
    %1 = vector.load %arg2[%c0_1, %c0_2] : memref<8x1xi32, #tpu.memory_space<vmem>>, vector<8x1xi32>
    %cst = arith.constant dense<0xFF800000> : vector<8xf32>
    %2 = vector.multi_reduction <maximumf>, %0, %cst [1] : vector<8x8xf32> to vector<8xf32>
    %3 = vector.shape_cast %2 : vector<8xf32> to vector<8x1xf32>
    %4 = vector.broadcast %3 : vector<8x1xf32> to vector<8x8xf32>
    %5 = arith.subf %0, %4 : vector<8x8xf32>
    %6 = math.exp %5 : vector<8x8xf32>
    %cst_3 = arith.constant dense<0.000000e+00> : vector<8xf32>
    %7 = vector.multi_reduction <add>, %6, %cst_3 [1] : vector<8x8xf32> to vector<8xf32>
    %8 = vector.shape_cast %7 : vector<8xf32> to vector<8x1xf32>
    %9 = math.log %8 : vector<8x1xf32>
    %10 = tpu.reciprocal %8 {approx = true} : vector<8x1xf32> -> vector<8x1xf32>
    %11 = arith.sitofp %1 : vector<8x1xi32> to vector<8x1xf32>
    %12 = vector.extract_strided_slice %6 {offsets = [0, 1], sizes = [8, 1], strides = [1, 1]} : vector<8x8xf32> to vector<8x1xf32>
    %13 = arith.mulf %12, %10 : vector<8x1xf32>
    %14 = arith.subf %13, %11 : vector<8x1xf32>
    %15 = math.absf %14 : vector<8x1xf32>
    %cst_4 = arith.constant -5.000000e-01 : f32
    %16 = vector.broadcast %cst_4 : f32 to vector<8x1xf32>
    %17 = arith.mulf %16, %15 : vector<8x1xf32>
    %18 = math.exp %17 : vector<8x1xf32>
    %19 = tpu.iota {dimensions = array<i32: 1>} : vector<8x8xi32>
    %20 = vector.broadcast %1 : vector<8x1xi32> to vector<8x8xi32>
    %21 = arith.cmpi eq, %19, %20 : vector<8x8xi32>
    %cst_5 = arith.constant 0.000000e+00 : f32
    %22 = vector.broadcast %cst_5 : f32 to vector<8x8xf32>
    %23 = arith.select %21, %5, %22 : vector<8x8xi1>, vector<8x8xf32>
    %cst_6 = arith.constant dense<0.000000e+00> : vector<8xf32>
    %24 = vector.multi_reduction <add>, %23, %cst_6 [1] : vector<8x8xf32> to vector<8xf32>
    %25 = vector.shape_cast %24 : vector<8xf32> to vector<8x1xf32>
    %26 = arith.subf %9, %25 : vector<8x1xf32>
    %cst_7 = arith.constant 0.000000e+00 : f32
    %27 = vector.broadcast %cst_7 : f32 to vector<8x8xf32>
    %c1_i32 = arith.constant 1 : i32
    %28 = tpu.dynamic_rotate %0 by %c1_i32 dim 0 : vector<8x8xf32>, i32 -> vector<8x8xf32>
    %29 = arith.subf %0, %28 : vector<8x8xf32>
    %30 = math.absf %29 : vector<8x8xf32>
    %31 = arith.addf %27, %30 : vector<8x8xf32>
    %c7_i32 = arith.constant 7 : i32
    %32 = tpu.dynamic_rotate %30 by %c7_i32 dim 0 : vector<8x8xf32>, i32 -> vector<8x8xf32>
    %33 = arith.addf %31, %32 : vector<8x8xf32>
    %c2_i32 = arith.constant 2 : i32
    %34 = tpu.dynamic_rotate %0 by %c2_i32 dim 0 : vector<8x8xf32>, i32 -> vector<8x8xf32>
    %35 = arith.subf %0, %34 : vector<8x8xf32>
    %36 = math.absf %35 : vector<8x8xf32>
    %37 = arith.addf %33, %36 : vector<8x8xf32>
    %c6_i32 = arith.constant 6 : i32
    %38 = tpu.dynamic_rotate %36 by %c6_i32 dim 0 : vector<8x8xf32>, i32 -> vector<8x8xf32>
    %39 = arith.addf %37, %38 : vector<8x8xf32>
    %c3_i32 = arith.constant 3 : i32
    %40 = tpu.dynamic_rotate %0 by %c3_i32 dim 0 : vector<8x8xf32>, i32 -> vector<8x8xf32>
    %41 = arith.subf %0, %40 : vector<8x8xf32>
    %42 = math.absf %41 : vector<8x8xf32>
    %43 = arith.addf %39, %42 : vector<8x8xf32>
    %c5_i32 = arith.constant 5 : i32
    %44 = tpu.dynamic_rotate %42 by %c5_i32 dim 0 : vector<8x8xf32>, i32 -> vector<8x8xf32>
    %45 = arith.addf %43, %44 : vector<8x8xf32>
    %c4_i32 = arith.constant 4 : i32
    %46 = tpu.dynamic_rotate %0 by %c4_i32 dim 0 : vector<8x8xf32>, i32 -> vector<8x8xf32>
    %47 = arith.subf %0, %46 : vector<8x8xf32>
    %48 = math.absf %47 : vector<8x8xf32>
    %49 = arith.addf %45, %48 : vector<8x8xf32>
    %cst_8 = arith.constant -1.000000e+00 : f32
    %50 = vector.broadcast %cst_8 : f32 to vector<8x8xf32>
    %51 = arith.mulf %50, %49 : vector<8x8xf32>
    %52 = math.exp %51 : vector<8x8xf32>
    %53 = tpu.iota {dimensions = array<i32: 1>} : vector<8x128xi32>
    %c0_i32 = arith.constant 0 : i32
    %54 = vector.broadcast %c0_i32 : i32 to vector<8x128xi32>
    %55 = arith.cmpi eq, %53, %54 : vector<8x128xi32>
    %56 = arith.mulf %18, %26 : vector<8x1xf32>
    %c1_i32_9 = arith.constant 1 : i32
    %57 = vector.broadcast %c1_i32_9 : i32 to vector<8x128xi32>
    %58 = arith.cmpi eq, %53, %57 : vector<8x128xi32>
    %cst_10 = arith.constant 0.000000e+00 : f32
    %59 = vector.shape_cast %18 : vector<8x1xf32> to vector<8x1xf32>
    %60 = vector.broadcast %59 : vector<8x1xf32> to vector<8x128xf32>
    %61 = vector.broadcast %cst_10 : f32 to vector<8x128xf32>
    %62 = arith.select %58, %60, %61 : vector<8x128xi1>, vector<8x128xf32>
    %63 = vector.shape_cast %56 : vector<8x1xf32> to vector<8x1xf32>
    %64 = vector.broadcast %63 : vector<8x1xf32> to vector<8x128xf32>
    %65 = arith.select %55, %64, %62 : vector<8x128xi1>, vector<8x128xf32>
    %cst_11 = arith.constant dense<0.000000e+00> : vector<8x128xf32>
    %66 = tpu.matmul %52, %65, %cst_11 {dimension_numbers = #tpu.dot_dimension_numbers<[1], [0], [0], [1], [0, 0, 1, 1], [], []>} : vector<8x8xf32>, vector<8x128xf32>, vector<8x128xf32> -> vector<8x128xf32>
    %67 = vector.extract_strided_slice %66 {offsets = [0, 0], sizes = [8, 2], strides = [1, 1]} : vector<8x128xf32> to vector<8x2xf32>
    %cst_12 = arith.constant dense<0.000000e+00> : vector<2xf32>
    %68 = vector.multi_reduction <add>, %67, %cst_12 [0] : vector<8x2xf32> to vector<2xf32>
    %69 = vector.shape_cast %68 : vector<2xf32> to vector<1x2xf32>
    %70 = vector.extract_strided_slice %69 {offsets = [0, 0], sizes = [1, 1], strides = [1, 1]} : vector<1x2xf32> to vector<1x1xf32>
    %71 = vector.extract_strided_slice %69 {offsets = [0, 1], sizes = [1, 1], strides = [1, 1]} : vector<1x2xf32> to vector<1x1xf32>
    %72 = arith.divf %70, %71 : vector<1x1xf32>
    %73 = arith.mulf %0, %0 : vector<8x8xf32>
    %74 = vector.shape_cast %73 : vector<8x8xf32> to vector<1x8x8xf32>
    %cst_13 = arith.constant dense<0.000000e+00> : vector<1xf32>
    %75 = vector.multi_reduction <add>, %74, %cst_13 [1, 2] : vector<1x8x8xf32> to vector<1xf32>
    %76 = vector.shape_cast %75 : vector<1xf32> to vector<1x1x1xf32>
    %77 = vector.extract %76[0, 0, 0] : f32 from vector<1x1x1xf32>
    %78 = vector.broadcast %77 : f32 to vector<1x1xf32>
    %cst_14 = arith.constant 6.400000e+01 : f32
    %79 = vector.broadcast %cst_14 : f32 to vector<1x1xf32>
    %80 = arith.divf %78, %79 : vector<1x1xf32>
    %cst_15 = arith.constant 0.00999999977 : f32
    %81 = vector.broadcast %cst_15 : f32 to vector<1x1xf32>
    %82 = arith.mulf %81, %80 : vector<1x1xf32>
    %83 = arith.addf %72, %82 : vector<1x1xf32>
    %c0_16 = arith.constant 0 : index
    %c0_17 = arith.constant 0 : index
    %84 = vector.load %arg3[%c0_16, %c0_17] : memref<1x1xf32, #tpu.memory_space<vmem>>, vector<1x1xf32>
    tpu.vector_store %arg3[%c0_16, %c0_17], %83 {strides = array<i32>} : memref<1x1xf32, #tpu.memory_space<vmem>>, vector<1x1xf32>,
    return
  }
  func.func @transform_0(%arg0: i32) -> (i32, i32) {
    %c0_i32 = arith.constant 0 : i32
    %c0_i32_0 = arith.constant 0 : i32
    %c0_i32_1 = arith.constant 0 : i32
    return %c0_i32, %c0_i32_0 : i32, i32
  }
  func.func @transform_1(%arg0: i32) -> (i32, i32) {
    %c0_i32 = arith.constant 0 : i32
    %c0_i32_0 = arith.constant 0 : i32
    %c0_i32_1 = arith.constant 0 : i32
    return %c0_i32, %c0_i32_0 : i32, i32
  }
  func.func @transform_2(%arg0: i32) -> (i32, i32) {
    %c0_i32 = arith.constant 0 : i32
    %c0_i32_0 = arith.constant 0 : i32
    %c0_i32_1 = arith.constant 0 : i32
    return %c0_i32, %c0_i32_0 : i32, i32
  }
}

</mosaic_0001>

<llo_original>
// kernel: tpu_custom_call.1
$region0: #{tpu_custom_call.1}
  #allocation0 [shape = 'u32[]', space=smem, size = 0x4, offset = 0x4, fixed_abs, tag = 'smem constant byte address 0x4 - core index']
  #allocation1 [shape = 'u32[144,128]{1,0:T(1,128)}', space=vmem, size = 0x12000, scoped, tag = 'internal scratch']
  %s0 = inlined_call_operand.vmem [shape: f32[8,8], index: 0, kind: input, shape index: {}]
  %s1 = inlined_call_operand.vmem [shape: s32[8,1], index: 1, kind: input, shape index: {}]
  %s2 = inlined_call_operand.hbm [shape: f32[1,1], index: 2, kind: output, shape index: {}]
  %s3 = sld [smem:[#allocation0]]
  $region18: #{tpu_custom_call.1} parent=0
    _
  %s5 = ssub.s32 1, %s3
  %s6 = scalar_select 0, %s5, %s3
  $region1: #{tpu_custom_call.1} parent=0
    #allocation2 [shape = 'u8[512]{0}', space=vmem, size = 0x400, scoped, tag = 'output window, operand 0, single buffered']
    #allocation3 [shape = 's32[1]{0}', space=sflag, size = 0x4, scoped, tag = 'scoped memory for tpu_custom_call.1']
    %7 = vsyncpa [#allocation3], 0
    // Predicated region
    $region2: #{tpu_custom_call.1} parent=1 // pred_check
      _
    $region3: #{tpu_custom_call.1} parent=1 // pred_check_branch
      %9 = sbr.rel (0) target = $region5
    $region4: #{tpu_custom_call.1} parent=1 // pred_region
      _
    $region5: #{tpu_custom_call.1} parent=1 // pred_fallthru
      _
    // Predicated region
    $region6: #{tpu_custom_call.1} parent=1 // pred_check
      _
    $region7: #{tpu_custom_call.1} parent=1 // pred_check_branch
      %11 = sbr.rel (0) target = $region9
    $region8: #{tpu_custom_call.1} parent=1 // pred_region
      _
    $region9: #{tpu_custom_call.1} parent=1 // pred_fallthru
      _
    %v12 = vld [vmem:[%s0] sm:$0xff]
    %v13 = vld [vmem:[%s1] sm:$0xff]
    %vm14 = vcmask 64512
    %v15 = vsel %vm14, %v12, -inf
    %16 = vmax.xlane.f32.xlu0 %v15
    %v17 = vpop.xlane.xlu0 %16
    %v18 = vsub.f32 %v12, %v17
    %v19 = vmul.f32 %v18, 1.442695
    %v20 = vpow.pop %v19
    %v21 = vsel %vm14, %v20, 0.0
    %22 = vadd.xlane.f32.xlu0 %v21
    %v23 = vpop.xlane.xlu0 %22
    %v24 = vlog2.pop %v23
    %v25 = vmul.f32 %v24, 0.6931472
    %v26 = vrcp.pop %v23
    %v27 = vcvt.s32.f32 %v13
    %v28 = vmul.f32 %v20, %v26
    %30 = vrot.lane.b32.xlu0 %v27, 1
    %v31 = vpop.permute.xlu0 %30
    %v33 = vsub.f32 %v28, %v31
    %v34 = vand.u32 2147483647, %v33
    %v35 = vmul.f32 %v34, -0.5
    %v36 = vmul.f32 %v35, 1.442695
    %v37 = vpow.pop %v36
    %v38 = vlaneseq
    %v39 = vand.u32 %v38, 127
    %40 = vset.pattern.permute.xlu0 0
    %41 = vperm.xlu0 %40, %v13
    %v42 = vpop.permute.xlu0 %41
    %vm43 = vcmp.eq.s32.totalorder %v39, %v42
    %v44 = vsel %vm43, %v18, 0.0
    %v45 = vsel %vm14, %v44, 0.0
    %46 = vadd.xlane.f32.xlu0 %v45
    %v47 = vpop.xlane.xlu0 %46
    %v48 = vsub.f32 %v25, %v47
    %v49 = vrot.slane %v12, 7
    %v50 = vsub.f32 %v12, %v49
    %v51 = vand.u32 2147483647, %v50
    %v52 = vadd.f32 %v51, 0.0
    %v53 = vrot.slane %v51, 1
    %v54 = vadd.f32 %v52, %v53
    %v55 = vrot.slane %v12, 6
    %v56 = vsub.f32 %v12, %v55
    %v57 = vand.u32 2147483647, %v56
    %v58 = vadd.f32 %v54, %v57
    %v59 = vrot.slane %v57, 2
    %v60 = vadd.f32 %v58, %v59
    %v61 = vrot.slane %v12, 5
    %v62 = vsub.f32 %v12, %v61
    %v63 = vand.u32 2147483647, %v62
    %v64 = vadd.f32 %v60, %v63
    %v65 = vrot.slane %v63, 3
    %v66 = vadd.f32 %v64, %v65
    %v67 = vrot.slane %v12, 4
    %v68 = vsub.f32 %v12, %v67
    %v69 = vand.u32 2147483647, %v68
    %v70 = vadd.f32 %v66, %v69
    %v71 = vmul.f32 %v70, -1.0
    %v72 = vmul.f32 %v71, 1.442695
    %v73 = vpow.pop %v72
    %vm74 = vcmp.eq.s32.totalorder %v39, 0
    %v75 = vmul.f32 %v37, %v48
    %vm76 = vcmp.eq.s32.totalorder %v39, 1
    %78 = vset.pattern.permute.xlu0 1
    %79 = vperm.xlu0 %78, %v37
    %v80 = vpop.permute.xlu0 %79
    %v82 = vsel %vm76, %v80, 0.0
    %84 = vset.pattern.permute.xlu0 1
    %85 = vperm.xlu0 %84, %v75
    %v86 = vpop.permute.xlu0 %85
    %v88 = vsel %vm74, %v86, %v82
    %v90 = vsel %vm14, %v73, 0
    %92 = vmatprep.subr.mxu0 0.0
    %93 = vmatpush1.msra.mxu0 %v88
    %94 = vmatprep.subr.mxu0 0.0
    %95 = vmatpush1.msra.mxu0 0.0
    %96 = vmatprep.subr.mxu0 0.0
    %97 = vmatpush1.msra.mxu0 0.0
    %98 = vmatprep.subr.mxu0 0.0
    %99 = vmatpush1.msra.mxu0 0.0
    %100 = vmatprep.subr.mxu0 0.0
    %101 = vmatpush1.msra.mxu0 0.0
    %102 = vmatprep.subr.mxu0 0.0
    %103 = vmatpush1.msra.mxu0 0.0
    %104 = vmatprep.subr.mxu0 0.0
    %105 = vmatpush1.msra.mxu0 0.0
    %106 = vmatprep.subr.mxu0 0.0
    %107 = vmatpush1.msra.mxu0 0.0
    %108 = vmatprep.subr.mxu0 0.0
    %109 = vmatpush1.msra.mxu0 0.0
    %110 = vmatprep.subr.mxu0 0.0
    %111 = vmatpush1.msra.mxu0 0.0
    %112 = vmatprep.subr.mxu0 0.0
    %113 = vmatpush1.msra.mxu0 0.0
    %114 = vmatprep.subr.mxu0 0.0
    %115 = vmatpush1.msra.mxu0 0.0
    %116 = vmatprep.subr.mxu0 0.0
    %117 = vmatpush1.msra.mxu0 0.0
    %118 = vmatprep.subr.mxu0 0.0
    %119 = vmatpush1.msra.mxu0 0.0
    %120 = vmatprep.subr.mxu0 0.0
    %121 = vmatpush1.msra.mxu0 0.0
    %122 = vmatprep.subr.mxu0 0.0
    %123 = vmatpush1.msra.mxu0 0.0
    %124 = vmatprep.subr.mxu0 0.0
    %125 = vmatpush1.msra.mxu0 0.0
    %126 = vmatprep.subr.mxu0 0.0
    %127 = vmatpush1.msra.mxu0 0.0
    %128 = vmatprep.subr.mxu0 0.0
    %129 = vmatpush1.msra.mxu0 0.0
    %130 = vmatprep.subr.mxu0 0.0
    %131 = vmatpush1.msra.mxu0 0.0
    %132 = vmatprep.subr.mxu0 0.0
    %133 = vmatpush1.msra.mxu0 0.0
    %134 = vmatprep.subr.mxu0 0.0
    %135 = vmatpush1.msra.mxu0 0.0
    %136 = vmatprep.subr.mxu0 0.0
    %137 = vmatpush1.msra.mxu0 0.0
    %138 = vmatprep.subr.mxu0 0.0
    %139 = vmatpush1.msra.mxu0 0.0
    %140 = vmatprep.subr.mxu0 0.0
    %141 = vmatpush1.msra.mxu0 0.0
    %142 = vmatprep.subr.mxu0 0.0
    %143 = vmatpush1.msra.mxu0 0.0
    %144 = vmatprep.subr.mxu0 0.0
    %145 = vmatpush1.msra.mxu0 0.0
    %146 = vmatprep.subr.mxu0 0.0
    %147 = vmatpush1.msra.mxu0 0.0
    %148 = vmatprep.subr.mxu0 0.0
    %149 = vmatpush1.msra.mxu0 0.0
    %150 = vmatprep.subr.mxu0 0.0
    %151 = vmatpush1.msra.mxu0 0.0
    %152 = vmatprep.subr.mxu0 0.0
    %153 = vmatpush1.msra.mxu0 0.0
    %154 = vmatprep.subr.mxu0 0.0
    %155 = vmatpush1.msra.mxu0 0.0
    %156 = vmatprep.mubr.f32.mxu0 0.0
    %157 = vmatmul.mubr.f32.gmra.mrb[0].mxu0 %v90
    %v158 = vpop.f32.mrb[0].mxu0
    %v159 = vadd.f32 0.0, %v158
    %v160 = vpop.f32.mrb[0].mxu0
    %161 = vdwg.mxu0
    %vm162 = vcmask 15360
    %v163 = vsel %vm162, %v159, 0.0
    %v164 = vrot.slane %v163, 4
    %v165 = vadd.f32 %v163, %v164
    %v166 = vrot.slane %v165, 2
    %v167 = vadd.f32 %v165, %v166
    %v168 = vrot.slane %v167, 1
    %v169 = vadd.f32 %v167, %v168
    %171 = vrot.lane.b32.xlu0 %v169, 127
    %v172 = vpop.permute.xlu0 %171
    %v174 = vrcp.pop %v172
    %v175 = vmul.f32 %v169, %v174
    %v176 = vmul.f32 %v12, %v12
    %v177 = vsel %vm14, %v176, 0.0
    %178 = vadd.xlane.f32.xlu0 %v177
    %v179 = vpop.xlane.xlu0 %178
    %v180 = vrot.slane %v179, 4
    %v181 = vadd.f32 %v179, %v180
    %v182 = vrot.slane %v181, 2
    %v183 = vadd.f32 %v181, %v182
    %v184 = vrot.slane %v183, 1
    %v185 = vadd.f32 %v183, %v184
    %s186 = vtos %v185
    %v187 = vstv %s186
    %v188 = vrcp.pop 64.0
    %v189 = vmul.f32 %v187, %v188
    %v190 = vmul.f32 %v189, 0.01
    %v191 = vadd.f32 %v175, %v190
    %vm192 = vcmask 0
    %193 = vst.msk [vmem:[#allocation2] sm:$0x1] %vm192, %v191
    // Predicated region
    $region10: #{tpu_custom_call.1} parent=1 // pred_check
      _
    $region11: #{tpu_custom_call.1} parent=1 // pred_check_branch
      %195 = sbr.rel (0) target = $region13
    $region12: #{tpu_custom_call.1} parent=1 // pred_region
      %s197 = ssub.s32 16, 16
      %198 = vsyncadd [#allocation3], %s197
      %s200 = sshll.u32 [#allocation2], 4
      %s201 = int_to_ptr.vmem [resolvable:$true] %s200
      %203 = dma.vmem_to_hbm [thread:$0]  %s201, 16, %s2, [#allocation3]
    $region13: #{tpu_custom_call.1} parent=1 // pred_fallthru
      _
    // Predicated region
    $region14: #{tpu_custom_call.1} parent=1 // pred_check
      _
    $region15: #{tpu_custom_call.1} parent=1 // pred_check_branch
      %205 = sbr.rel (0) target = $region17
    $region16: #{tpu_custom_call.1} parent=1 // pred_region
      %206 = dma.done [#allocation3], 16
    $region17: #{tpu_custom_call.1} parent=1 // pred_fallthru
      _
    %207 = vsyncpa [#allocation3], 1

</llo_original>
